<compile_context>
chip_gen: v6e
topology: v6e:2x2x1
jax: 0.10.0
libtpu: 0.0.40
codegen_flags: <defaults>
</compile_context>

<pallas_src>
from functools import partial

import jax
import jax.numpy as jnp
from jax.experimental import pallas as pl
from jax.experimental.pallas import tpu as pltpu

EPS = 1e-6
NEG_CLAMP = -1e30  # finite stand-in for log(0) = -inf; exp(NEG_CLAMP) == 0 in f32


def _logsumexp(r, axis):
    # r is finite (clamped), so the plain max/exp/sum/log form is stable.
    m = jnp.max(r, axis=axis, keepdims=True)
    return jnp.log(jnp.sum(jnp.exp(r - m), axis=axis, keepdims=True)) + m


def _attn_perm_kernel(sq_ref, sk_ref, u_ref, o_ref, *, scale, inv_temperature, n_iters):
    # sq_ref, sk_ref: (Bc, N, E)  -- H-mean already applied, contraction axis last
    # u_ref:          (Bc, N, N)  uniform(0,1) draws
    # o_ref:          (Bc, N, N)
    sq = sq_ref[...].astype(jnp.float32)
    sk = sk_ref[...].astype(jnp.float32)

    # einsum('bie,bje->bij'): batched MXU matmul over all resident batches.
    R = jnp.einsum("bie,bje->bij", sq, sk, preferred_element_type=jnp.float32)
    R = jnp.maximum(R * scale, 0.0)          # * H**-0.5 then F.relu

    # gumbel_sinkhorn: log, add gumbel noise, scale by 1/temperature
    u = u_ref[...].astype(jnp.float32)
    gumbel = -jnp.log(-jnp.log(u + EPS) + EPS)
    r = (jnp.log(R) + gumbel) * inv_temperature
    # One-time finite clamp: relu-zeroed entries give log(0) = -inf; clamping once
    # here keeps every per-iteration logsumexp guard-free and NaN-free.
    r = jnp.maximum(r, NEG_CLAMP)

    # sinkhorn_sorting_operator (torch dims: 2 == last axis, 1 == middle axis).
    # Unrolled Python loop: keeps the EUP/XLU chains of the Bc batches visible
    # to the scheduler so they interleave.
    for _ in range(n_iters):
        r = r - _logsumexp(r, axis=2)
        r = r - _logsumexp(r, axis=1)

    o_ref[...] = jnp.exp(r).astype(o_ref.dtype)


def attention_perm_matrix(b_q, b_k, u_noise, *, temperature, sinkhorn_iter, num_chunks=1):
    """Pallas implementation of AttentionPermMatrix.forward.

    b_q, b_k: (B, H, E, N); u_noise: (B, N, N) uniform(0,1). Returns (B, N, N).
    num_chunks: number of grid steps over the batch (1 on v5e/v6e; 2 on v7x to
    use both TensorCores via the "parallel" grid axis).
    """
    B, H, E, N = b_q.shape
    assert b_k.shape == (B, H, E, N)
    assert u_noise.shape == (B, N, N)

    if num_chunks < 1 or B % num_chunks != 0:
        num_chunks = 1
    bc = B // num_chunks

    # Hoist the H-mean and the transpose out of the kernel: the kernel only sees
    # (B, N, E) per operand (H x less DMA) with the contraction axis E last.
    sq = jnp.swapaxes(jnp.mean(b_q.astype(jnp.float32), axis=1), 1, 2)  # (B, N, E)
    sk = jnp.swapaxes(jnp.mean(b_k.astype(jnp.float32), axis=1), 1, 2)  # (B, N, E)

    kernel = partial(
        _attn_perm_kernel,
        scale=float(H) ** -0.5,
        inv_temperature=1.0 / float(temperature),
        n_iters=int(sinkhorn_iter),
    )

    # NOTE: if N is ever scaled up, re-derive the VMEM budget (v7x has 64 MiB
    # physical / 32 MiB scoped default) and tile the sinkhorn; at N=8 this is moot.
    return pl.pallas_call(
        kernel,
        out_shape=jax.ShapeDtypeStruct((B, N, N), jnp.float32),
        grid_spec=pltpu.PrefetchScalarGridSpec(
            num_scalar_prefetch=0,
            grid=(num_chunks,),
            in_specs=[
                pl.BlockSpec((bc, N, E), lambda c: (c, 0, 0)),
                pl.BlockSpec((bc, N, E), lambda c: (c, 0, 0)),
                pl.BlockSpec((bc, N, N), lambda c: (c, 0, 0)),
            ],
            out_specs=pl.BlockSpec((bc, N, N), lambda c: (c, 0, 0)),
        ),
        compiler_params=pltpu.CompilerParams(
            dimension_semantics=("parallel",),
        ),
    )(sq, sk, u_noise)


if __name__ == "__main__":
    # Small shapes consistent with the forward: batch=2, averaged dim (heads)=4,
    # feature dim=32, blocks=8 -> output permutation matrices (2, 8, 8).
    B, H, E, N = 2, 4, 32, 8
    blocks = N
    temperature = 0.007       # module constructor args (GANet defaults)
    sinkhorn_iter = 8

    key = jax.random.PRNGKey(0)
    kq, kk, ku = jax.random.split(key, 3)
    b_q = jax.random.normal(kq, (B, H, E, N), dtype=jnp.float32)
    b_k = jax.random.normal(kk, (B, H, E, N), dtype=jnp.float32)
    # TODO(synk): torch's in-place .uniform_(0,1) RNG stream has no JAX equivalent;
    # the uniform(0,1) gumbel base draw is taken from jax.random instead.
    u_noise = jax.random.uniform(ku, (B, N, N), dtype=jnp.float32)

    out = attention_perm_matrix(
        b_q, b_k, u_noise, temperature=temperature, sinkhorn_iter=sinkhorn_iter
    )
    jax.block_until_ready(out)
    assert out.shape == (B, blocks, blocks)
    assert bool(jnp.all(jnp.isfinite(out)))
    print("KERNEL_OK")
</pallas_src>

<mosaic_0001>
module attributes {stable_mosaic.version = 11 : i64} {
  func.func @_attn_perm_kernel(%arg0: i32, %arg1: memref<2x8x32xf32, #tpu.memory_space<vmem>>, %arg2: memref<2x8x32xf32, #tpu.memory_space<vmem>>, %arg3: memref<2x8x8xf32, #tpu.memory_space<vmem>>, %arg4: memref<2x8x8xf32, #tpu.memory_space<vmem>>) attributes {dimension_semantics = [#tpu.dimension_semantics<parallel>], iteration_bounds = array<i64: 1>, scalar_prefetch = 0 : i64, scratch_operands = 0 : i64, tpu.core_type = #tpu.core_type<tc>, window_params = [{transform_indices = @transform_0, window_bounds = array<i64: 2, 8, 32>}, {transform_indices = @transform_1, window_bounds = array<i64: 2, 8, 32>}, {transform_indices = @transform_2, window_bounds = array<i64: 2, 8, 8>}, {transform_indices = @transform_3, window_bounds = array<i64: 2, 8, 8>}]} {
    %c0 = arith.constant 0 : index
    %c0_0 = arith.constant 0 : index
    %c0_1 = arith.constant 0 : index
    %0 = vector.load %arg1[%c0, %c0_0, %c0_1] : memref<2x8x32xf32, #tpu.memory_space<vmem>>, vector<2x8x32xf32>
    %c0_2 = arith.constant 0 : index
    %c0_3 = arith.constant 0 : index
    %c0_4 = arith.constant 0 : index
    %1 = vector.load %arg2[%c0_2, %c0_3, %c0_4] : memref<2x8x32xf32, #tpu.memory_space<vmem>>, vector<2x8x32xf32>
    "tpu.trace_start"() <{level = 10 : i32, message = "bie,bje->bij"}> : () -> ()
    %cst = arith.constant dense<0.000000e+00> : vector<2x8x8xf32>
    %2 = tpu.matmul %0, %1, %cst {dimension_numbers = #tpu.dot_dimension_numbers<[2], [2], [1], [1], [0, 0, 0, 1, 1, 1], [0], [0]>} : vector<2x8x32xf32>, vector<2x8x32xf32>, vector<2x8x8xf32> -> vector<2x8x8xf32>
    "tpu.trace_stop"() : () -> ()
    %cst_5 = arith.constant 5.000000e-01 : f32
    %3 = vector.broadcast %cst_5 : f32 to vector<2x8x8xf32>
    %4 = arith.mulf %2, %3 : vector<2x8x8xf32>
    %cst_6 = arith.constant 0.000000e+00 : f32
    %5 = vector.broadcast %cst_6 : f32 to vector<2x8x8xf32>
    %6 = arith.maximumf %4, %5 : vector<2x8x8xf32>
    %c0_7 = arith.constant 0 : index
    %c0_8 = arith.constant 0 : index
    %c0_9 = arith.constant 0 : index
    %7 = vector.load %arg3[%c0_7, %c0_8, %c0_9] : memref<2x8x8xf32, #tpu.memory_space<vmem>>, vector<2x8x8xf32>
    %cst_10 = arith.constant 9.99999997E-7 : f32
    %8 = vector.broadcast %cst_10 : f32 to vector<2x8x8xf32>
    %9 = arith.addf %7, %8 : vector<2x8x8xf32>
    %10 = math.log %9 : vector<2x8x8xf32>
    %cst_11 = arith.constant 0.000000e+00 : f32
    %11 = vector.broadcast %cst_11 : f32 to vector<2x8x8xf32>
    %12 = arith.subf %11, %10 : vector<2x8x8xf32>
    %cst_12 = arith.constant 9.99999997E-7 : f32
    %13 = vector.broadcast %cst_12 : f32 to vector<2x8x8xf32>
    %14 = arith.addf %12, %13 : vector<2x8x8xf32>
    %15 = math.log %14 : vector<2x8x8xf32>
    %cst_13 = arith.constant 0.000000e+00 : f32
    %16 = vector.broadcast %cst_13 : f32 to vector<2x8x8xf32>
    %17 = arith.subf %16, %15 : vector<2x8x8xf32>
    %18 = math.log %6 : vector<2x8x8xf32>
    %19 = arith.addf %18, %17 : vector<2x8x8xf32>
    %cst_14 = arith.constant 142.857147 : f32
    %20 = vector.broadcast %cst_14 : f32 to vector<2x8x8xf32>
    %21 = arith.mulf %19, %20 : vector<2x8x8xf32>
    %cst_15 = arith.constant -1.000000e+30 : f32
    %22 = vector.broadcast %cst_15 : f32 to vector<2x8x8xf32>
    %23 = arith.maximumf %21, %22 : vector<2x8x8xf32>
    %cst_16 = arith.constant dense<0xFF800000> : vector<2x8xf32>
    %24 = vector.multi_reduction <maximumf>, %23, %cst_16 [2] : vector<2x8x8xf32> to vector<2x8xf32>
    %25 = vector.shape_cast %24 : vector<2x8xf32> to vector<2x8x1xf32>
    %26 = vector.broadcast %25 : vector<2x8x1xf32> to vector<2x8x8xf32>
    %27 = arith.subf %23, %26 : vector<2x8x8xf32>
    %28 = math.exp %27 : vector<2x8x8xf32>
    %cst_17 = arith.constant dense<0.000000e+00> : vector<2x8xf32>
    %29 = vector.multi_reduction <add>, %28, %cst_17 [2] : vector<2x8x8xf32> to vector<2x8xf32>
    %30 = vector.shape_cast %29 : vector<2x8xf32> to vector<2x8x1xf32>
    %31 = math.log %30 : vector<2x8x1xf32>
    %32 = arith.addf %31, %25 : vector<2x8x1xf32>
    %33 = vector.broadcast %32 : vector<2x8x1xf32> to vector<2x8x8xf32>
    %34 = arith.subf %23, %33 : vector<2x8x8xf32>
    %cst_18 = arith.constant dense<0xFF800000> : vector<2x8xf32>
    %35 = vector.multi_reduction <maximumf>, %34, %cst_18 [1] : vector<2x8x8xf32> to vector<2x8xf32>
    %36 = vector.shape_cast %35 : vector<2x8xf32> to vector<2x1x8xf32>
    %37 = vector.broadcast %36 : vector<2x1x8xf32> to vector<2x8x8xf32>
    %38 = arith.subf %34, %37 : vector<2x8x8xf32>
    %39 = math.exp %38 : vector<2x8x8xf32>
    %cst_19 = arith.constant dense<0.000000e+00> : vector<2x8xf32>
    %40 = vector.multi_reduction <add>, %39, %cst_19 [1] : vector<2x8x8xf32> to vector<2x8xf32>
    %41 = vector.shape_cast %40 : vector<2x8xf32> to vector<2x1x8xf32>
    %42 = math.log %41 : vector<2x1x8xf32>
    %43 = arith.addf %42, %36 : vector<2x1x8xf32>
    %44 = vector.broadcast %43 : vector<2x1x8xf32> to vector<2x8x8xf32>
    %45 = arith.subf %34, %44 : vector<2x8x8xf32>
    %cst_20 = arith.constant dense<0xFF800000> : vector<2x8xf32>
    %46 = vector.multi_reduction <maximumf>, %45, %cst_20 [2] : vector<2x8x8xf32> to vector<2x8xf32>
    %47 = vector.shape_cast %46 : vector<2x8xf32> to vector<2x8x1xf32>
    %48 = vector.broadcast %47 : vector<2x8x1xf32> to vector<2x8x8xf32>
    %49 = arith.subf %45, %48 : vector<2x8x8xf32>
    %50 = math.exp %49 : vector<2x8x8xf32>
    %cst_21 = arith.constant dense<0.000000e+00> : vector<2x8xf32>
    %51 = vector.multi_reduction <add>, %50, %cst_21 [2] : vector<2x8x8xf32> to vector<2x8xf32>
    %52 = vector.shape_cast %51 : vector<2x8xf32> to vector<2x8x1xf32>
    %53 = math.log %52 : vector<2x8x1xf32>
    %54 = arith.addf %53, %47 : vector<2x8x1xf32>
    %55 = vector.broadcast %54 : vector<2x8x1xf32> to vector<2x8x8xf32>
    %56 = arith.subf %45, %55 : vector<2x8x8xf32>
    %cst_22 = arith.constant dense<0xFF800000> : vector<2x8xf32>
    %57 = vector.multi_reduction <maximumf>, %56, %cst_22 [1] : vector<2x8x8xf32> to vector<2x8xf32>
    %58 = vector.shape_cast %57 : vector<2x8xf32> to vector<2x1x8xf32>
    %59 = vector.broadcast %58 : vector<2x1x8xf32> to vector<2x8x8xf32>
    %60 = arith.subf %56, %59 : vector<2x8x8xf32>
    %61 = math.exp %60 : vector<2x8x8xf32>
    %cst_23 = arith.constant dense<0.000000e+00> : vector<2x8xf32>
    %62 = vector.multi_reduction <add>, %61, %cst_23 [1] : vector<2x8x8xf32> to vector<2x8xf32>
    %63 = vector.shape_cast %62 : vector<2x8xf32> to vector<2x1x8xf32>
    %64 = math.log %63 : vector<2x1x8xf32>
    %65 = arith.addf %64, %58 : vector<2x1x8xf32>
    %66 = vector.broadcast %65 : vector<2x1x8xf32> to vector<2x8x8xf32>
    %67 = arith.subf %56, %66 : vector<2x8x8xf32>
    %cst_24 = arith.constant dense<0xFF800000> : vector<2x8xf32>
    %68 = vector.multi_reduction <maximumf>, %67, %cst_24 [2] : vector<2x8x8xf32> to vector<2x8xf32>
    %69 = vector.shape_cast %68 : vector<2x8xf32> to vector<2x8x1xf32>
    %70 = vector.broadcast %69 : vector<2x8x1xf32> to vector<2x8x8xf32>
    %71 = arith.subf %67, %70 : vector<2x8x8xf32>
    %72 = math.exp %71 : vector<2x8x8xf32>
    %cst_25 = arith.constant dense<0.000000e+00> : vector<2x8xf32>
    %73 = vector.multi_reduction <add>, %72, %cst_25 [2] : vector<2x8x8xf32> to vector<2x8xf32>
    %74 = vector.shape_cast %73 : vector<2x8xf32> to vector<2x8x1xf32>
    %75 = math.log %74 : vector<2x8x1xf32>
    %76 = arith.addf %75, %69 : vector<2x8x1xf32>
    %77 = vector.broadcast %76 : vector<2x8x1xf32> to vector<2x8x8xf32>
    %78 = arith.subf %67, %77 : vector<2x8x8xf32>
    %cst_26 = arith.constant dense<0xFF800000> : vector<2x8xf32>
    %79 = vector.multi_reduction <maximumf>, %78, %cst_26 [1] : vector<2x8x8xf32> to vector<2x8xf32>
    %80 = vector.shape_cast %79 : vector<2x8xf32> to vector<2x1x8xf32>
    %81 = vector.broadcast %80 : vector<2x1x8xf32> to vector<2x8x8xf32>
    %82 = arith.subf %78, %81 : vector<2x8x8xf32>
    %83 = math.exp %82 : vector<2x8x8xf32>
    %cst_27 = arith.constant dense<0.000000e+00> : vector<2x8xf32>
    %84 = vector.multi_reduction <add>, %83, %cst_27 [1] : vector<2x8x8xf32> to vector<2x8xf32>
    %85 = vector.shape_cast %84 : vector<2x8xf32> to vector<2x1x8xf32>
    %86 = math.log %85 : vector<2x1x8xf32>
    %87 = arith.addf %86, %80 : vector<2x1x8xf32>
    %88 = vector.broadcast %87 : vector<2x1x8xf32> to vector<2x8x8xf32>
    %89 = arith.subf %78, %88 : vector<2x8x8xf32>
    %cst_28 = arith.constant dense<0xFF800000> : vector<2x8xf32>
    %90 = vector.multi_reduction <maximumf>, %89, %cst_28 [2] : vector<2x8x8xf32> to vector<2x8xf32>
    %91 = vector.shape_cast %90 : vector<2x8xf32> to vector<2x8x1xf32>
    %92 = vector.broadcast %91 : vector<2x8x1xf32> to vector<2x8x8xf32>
    %93 = arith.subf %89, %92 : vector<2x8x8xf32>
    %94 = math.exp %93 : vector<2x8x8xf32>
    %cst_29 = arith.constant dense<0.000000e+00> : vector<2x8xf32>
    %95 = vector.multi_reduction <add>, %94, %cst_29 [2] : vector<2x8x8xf32> to vector<2x8xf32>
    %96 = vector.shape_cast %95 : vector<2x8xf32> to vector<2x8x1xf32>
    %97 = math.log %96 : vector<2x8x1xf32>
    %98 = arith.addf %97, %91 : vector<2x8x1xf32>
    %99 = vector.broadcast %98 : vector<2x8x1xf32> to vector<2x8x8xf32>
    %100 = arith.subf %89, %99 : vector<2x8x8xf32>
    %cst_30 = arith.constant dense<0xFF800000> : vector<2x8xf32>
    %101 = vector.multi_reduction <maximumf>, %100, %cst_30 [1] : vector<2x8x8xf32> to vector<2x8xf32>
    %102 = vector.shape_cast %101 : vector<2x8xf32> to vector<2x1x8xf32>
    %103 = vector.broadcast %102 : vector<2x1x8xf32> to vector<2x8x8xf32>
    %104 = arith.subf %100, %103 : vector<2x8x8xf32>
    %105 = math.exp %104 : vector<2x8x8xf32>
    %cst_31 = arith.constant dense<0.000000e+00> : vector<2x8xf32>
    %106 = vector.multi_reduction <add>, %105, %cst_31 [1] : vector<2x8x8xf32> to vector<2x8xf32>
    %107 = vector.shape_cast %106 : vector<2x8xf32> to vector<2x1x8xf32>
    %108 = math.log %107 : vector<2x1x8xf32>
    %109 = arith.addf %108, %102 : vector<2x1x8xf32>
    %110 = vector.broadcast %109 : vector<2x1x8xf32> to vector<2x8x8xf32>
    %111 = arith.subf %100, %110 : vector<2x8x8xf32>
    %cst_32 = arith.constant dense<0xFF800000> : vector<2x8xf32>
    %112 = vector.multi_reduction <maximumf>, %111, %cst_32 [2] : vector<2x8x8xf32> to vector<2x8xf32>
    %113 = vector.shape_cast %112 : vector<2x8xf32> to vector<2x8x1xf32>
    %114 = vector.broadcast %113 : vector<2x8x1xf32> to vector<2x8x8xf32>
    %115 = arith.subf %111, %114 : vector<2x8x8xf32>
    %116 = math.exp %115 : vector<2x8x8xf32>
    %cst_33 = arith.constant dense<0.000000e+00> : vector<2x8xf32>
    %117 = vector.multi_reduction <add>, %116, %cst_33 [2] : vector<2x8x8xf32> to vector<2x8xf32>
    %118 = vector.shape_cast %117 : vector<2x8xf32> to vector<2x8x1xf32>
    %119 = math.log %118 : vector<2x8x1xf32>
    %120 = arith.addf %119, %113 : vector<2x8x1xf32>
    %121 = vector.broadcast %120 : vector<2x8x1xf32> to vector<2x8x8xf32>
    %122 = arith.subf %111, %121 : vector<2x8x8xf32>
    %cst_34 = arith.constant dense<0xFF800000> : vector<2x8xf32>
    %123 = vector.multi_reduction <maximumf>, %122, %cst_34 [1] : vector<2x8x8xf32> to vector<2x8xf32>
    %124 = vector.shape_cast %123 : vector<2x8xf32> to vector<2x1x8xf32>
    %125 = vector.broadcast %124 : vector<2x1x8xf32> to vector<2x8x8xf32>
    %126 = arith.subf %122, %125 : vector<2x8x8xf32>
    %127 = math.exp %126 : vector<2x8x8xf32>
    %cst_35 = arith.constant dense<0.000000e+00> : vector<2x8xf32>
    %128 = vector.multi_reduction <add>, %127, %cst_35 [1] : vector<2x8x8xf32> to vector<2x8xf32>
    %129 = vector.shape_cast %128 : vector<2x8xf32> to vector<2x1x8xf32>
    %130 = math.log %129 : vector<2x1x8xf32>
    %131 = arith.addf %130, %124 : vector<2x1x8xf32>
    %132 = vector.broadcast %131 : vector<2x1x8xf32> to vector<2x8x8xf32>
    %133 = arith.subf %122, %132 : vector<2x8x8xf32>
    %cst_36 = arith.constant dense<0xFF800000> : vector<2x8xf32>
    %134 = vector.multi_reduction <maximumf>, %133, %cst_36 [2] : vector<2x8x8xf32> to vector<2x8xf32>
    %135 = vector.shape_cast %134 : vector<2x8xf32> to vector<2x8x1xf32>
    %136 = vector.broadcast %135 : vector<2x8x1xf32> to vector<2x8x8xf32>
    %137 = arith.subf %133, %136 : vector<2x8x8xf32>
    %138 = math.exp %137 : vector<2x8x8xf32>
    %cst_37 = arith.constant dense<0.000000e+00> : vector<2x8xf32>
    %139 = vector.multi_reduction <add>, %138, %cst_37 [2] : vector<2x8x8xf32> to vector<2x8xf32>
    %140 = vector.shape_cast %139 : vector<2x8xf32> to vector<2x8x1xf32>
    %141 = math.log %140 : vector<2x8x1xf32>
    %142 = arith.addf %141, %135 : vector<2x8x1xf32>
    %143 = vector.broadcast %142 : vector<2x8x1xf32> to vector<2x8x8xf32>
    %144 = arith.subf %133, %143 : vector<2x8x8xf32>
    %cst_38 = arith.constant dense<0xFF800000> : vector<2x8xf32>
    %145 = vector.multi_reduction <maximumf>, %144, %cst_38 [1] : vector<2x8x8xf32> to vector<2x8xf32>
    %146 = vector.shape_cast %145 : vector<2x8xf32> to vector<2x1x8xf32>
    %147 = vector.broadcast %146 : vector<2x1x8xf32> to vector<2x8x8xf32>
    %148 = arith.subf %144, %147 : vector<2x8x8xf32>
    %149 = math.exp %148 : vector<2x8x8xf32>
    %cst_39 = arith.constant dense<0.000000e+00> : vector<2x8xf32>
    %150 = vector.multi_reduction <add>, %149, %cst_39 [1] : vector<2x8x8xf32> to vector<2x8xf32>
    %151 = vector.shape_cast %150 : vector<2x8xf32> to vector<2x1x8xf32>
    %152 = math.log %151 : vector<2x1x8xf32>
    %153 = arith.addf %152, %146 : vector<2x1x8xf32>
    %154 = vector.broadcast %153 : vector<2x1x8xf32> to vector<2x8x8xf32>
    %155 = arith.subf %144, %154 : vector<2x8x8xf32>
    %cst_40 = arith.constant dense<0xFF800000> : vector<2x8xf32>
    %156 = vector.multi_reduction <maximumf>, %155, %cst_40 [2] : vector<2x8x8xf32> to vector<2x8xf32>
    %157 = vector.shape_cast %156 : vector<2x8xf32> to vector<2x8x1xf32>
    %158 = vector.broadcast %157 : vector<2x8x1xf32> to vector<2x8x8xf32>
    %159 = arith.subf %155, %158 : vector<2x8x8xf32>
    %160 = math.exp %159 : vector<2x8x8xf32>
    %cst_41 = arith.constant dense<0.000000e+00> : vector<2x8xf32>
    %161 = vector.multi_reduction <add>, %160, %cst_41 [2] : vector<2x8x8xf32> to vector<2x8xf32>
    %162 = vector.shape_cast %161 : vector<2x8xf32> to vector<2x8x1xf32>
    %163 = math.log %162 : vector<2x8x1xf32>
    %164 = arith.addf %163, %157 : vector<2x8x1xf32>
    %165 = vector.broadcast %164 : vector<2x8x1xf32> to vector<2x8x8xf32>
    %166 = arith.subf %155, %165 : vector<2x8x8xf32>
    %cst_42 = arith.constant dense<0xFF800000> : vector<2x8xf32>
    %167 = vector.multi_reduction <maximumf>, %166, %cst_42 [1] : vector<2x8x8xf32> to vector<2x8xf32>
    %168 = vector.shape_cast %167 : vector<2x8xf32> to vector<2x1x8xf32>
    %169 = vector.broadcast %168 : vector<2x1x8xf32> to vector<2x8x8xf32>
    %170 = arith.subf %166, %169 : vector<2x8x8xf32>
    %171 = math.exp %170 : vector<2x8x8xf32>
    %cst_43 = arith.constant dense<0.000000e+00> : vector<2x8xf32>
    %172 = vector.multi_reduction <add>, %171, %cst_43 [1] : vector<2x8x8xf32> to vector<2x8xf32>
    %173 = vector.shape_cast %172 : vector<2x8xf32> to vector<2x1x8xf32>
    %174 = math.log %173 : vector<2x1x8xf32>
    %175 = arith.addf %174, %168 : vector<2x1x8xf32>
    %176 = vector.broadcast %175 : vector<2x1x8xf32> to vector<2x8x8xf32>
    %177 = arith.subf %166, %176 : vector<2x8x8xf32>
    %cst_44 = arith.constant dense<0xFF800000> : vector<2x8xf32>
    %178 = vector.multi_reduction <maximumf>, %177, %cst_44 [2] : vector<2x8x8xf32> to vector<2x8xf32>
    %179 = vector.shape_cast %178 : vector<2x8xf32> to vector<2x8x1xf32>
    %180 = vector.broadcast %179 : vector<2x8x1xf32> to vector<2x8x8xf32>
    %181 = arith.subf %177, %180 : vector<2x8x8xf32>
    %182 = math.exp %181 : vector<2x8x8xf32>
    %cst_45 = arith.constant dense<0.000000e+00> : vector<2x8xf32>
    %183 = vector.multi_reduction <add>, %182, %cst_45 [2] : vector<2x8x8xf32> to vector<2x8xf32>
    %184 = vector.shape_cast %183 : vector<2x8xf32> to vector<2x8x1xf32>
    %185 = math.log %184 : vector<2x8x1xf32>
    %186 = arith.addf %185, %179 : vector<2x8x1xf32>
    %187 = vector.broadcast %186 : vector<2x8x1xf32> to vector<2x8x8xf32>
    %188 = arith.subf %177, %187 : vector<2x8x8xf32>
    %cst_46 = arith.constant dense<0xFF800000> : vector<2x8xf32>
    %189 = vector.multi_reduction <maximumf>, %188, %cst_46 [1] : vector<2x8x8xf32> to vector<2x8xf32>
    %190 = vector.shape_cast %189 : vector<2x8xf32> to vector<2x1x8xf32>
    %191 = vector.broadcast %190 : vector<2x1x8xf32> to vector<2x8x8xf32>
    %192 = arith.subf %188, %191 : vector<2x8x8xf32>
    %193 = math.exp %192 : vector<2x8x8xf32>
    %cst_47 = arith.constant dense<0.000000e+00> : vector<2x8xf32>
    %194 = vector.multi_reduction <add>, %193, %cst_47 [1] : vector<2x8x8xf32> to vector<2x8xf32>
    %195 = vector.shape_cast %194 : vector<2x8xf32> to vector<2x1x8xf32>
    %196 = math.log %195 : vector<2x1x8xf32>
    %197 = arith.addf %196, %190 : vector<2x1x8xf32>
    %198 = vector.broadcast %197 : vector<2x1x8xf32> to vector<2x8x8xf32>
    %199 = arith.subf %188, %198 : vector<2x8x8xf32>
    %200 = math.exp %199 : vector<2x8x8xf32>
    %c0_48 = arith.constant 0 : index
    %c0_49 = arith.constant 0 : index
    %c0_50 = arith.constant 0 : index
    %201 = vector.load %arg4[%c0_48, %c0_49, %c0_50] : memref<2x8x8xf32, #tpu.memory_space<vmem>>, vector<2x8x8xf32>
    tpu.vector_store %arg4[%c0_48, %c0_49, %c0_50], %200 {strides = array<i32>} : memref<2x8x8xf32, #tpu.memory_space<vmem>>, vector<2x8x8xf32>,
    return
  }
  func.func @transform_0(%arg0: i32) -> (i32, i32, i32) {
    %c0_i32 = arith.constant 0 : i32
    %c0_i32_0 = arith.constant 0 : i32
    %c0_i32_1 = arith.constant 0 : i32
    return %arg0, %c0_i32, %c0_i32_0 : i32, i32, i32
  }
  func.func @transform_1(%arg0: i32) -> (i32, i32, i32) {
    %c0_i32 = arith.constant 0 : i32
    %c0_i32_0 = arith.constant 0 : i32
    %c0_i32_1 = arith.constant 0 : i32
    return %arg0, %c0_i32, %c0_i32_0 : i32, i32, i32
  }
  func.func @transform_2(%arg0: i32) -> (i32, i32, i32) {
    %c0_i32 = arith.constant 0 : i32
    %c0_i32_0 = arith.constant 0 : i32
    %c0_i32_1 = arith.constant 0 : i32
    return %arg0, %c0_i32, %c0_i32_0 : i32, i32, i32
  }
  func.func @transform_3(%arg0: i32) -> (i32, i32, i32) {
    %c0_i32 = arith.constant 0 : i32
    %c0_i32_0 = arith.constant 0 : i32
    %c0_i32_1 = arith.constant 0 : i32
    return %arg0, %c0_i32, %c0_i32_0 : i32, i32, i32
  }
}

</mosaic_0001>

<llo_original>
// kernel: tpu_custom_call.1
$region0: #{tpu_custom_call.1}
  #allocation0 [shape = 'u32[]', space=smem, size = 0x4, offset = 0x4, fixed_abs, tag = 'smem constant byte address 0x4 - core index']
  #allocation1 [shape = 'u32[144,128]{1,0:T(1,128)}', space=vmem, size = 0x12000, scoped, tag = 'internal scratch']
  %s0 = inlined_call_operand.hbm [shape: f32[2,8,32], index: 0, kind: input, shape index: {}]
  %s1 = inlined_call_operand.hbm [shape: f32[2,8,32], index: 1, kind: input, shape index: {}]
  %s2 = inlined_call_operand.hbm [shape: f32[2,8,8], index: 2, kind: input, shape index: {}]
  %s3 = inlined_call_operand.hbm [shape: f32[2,8,8], index: 3, kind: output, shape index: {}]
  %s4 = sld [smem:[#allocation0]]
  $region34: #{tpu_custom_call.1} parent=0
    _
  %s6 = ssub.s32 1, %s4
  %s7 = scalar_select 0, %s6, %s4
  $region1: #{tpu_custom_call.1} parent=0
    #allocation2 [shape = 'u8[8192]{0}', space=vmem, size = 0x2000, scoped, tag = 'input window, operand 0, single buffered']
    #allocation3 [shape = 's32[1]{0}', space=sflag, size = 0x4, scoped, tag = 'scoped memory for tpu_custom_call.1']
    #allocation4 [shape = 's32[1]{0}', space=sflag, size = 0x4, scoped, tag = 'scoped memory for tpu_custom_call.1']
    #allocation5 [shape = 'u8[8192]{0}', space=vmem, size = 0x2000, scoped, tag = 'input window, operand 1, single buffered']
    #allocation6 [shape = 's32[1]{0}', space=sflag, size = 0x4, scoped, tag = 'scoped memory for tpu_custom_call.1']
    #allocation7 [shape = 'u8[8192]{0}', space=vmem, size = 0x2000, scoped, tag = 'input window, operand 2, single buffered']
    #allocation8 [shape = 'u8[8192]{0}', space=vmem, size = 0x2000, scoped, tag = 'output window, operand 0, single buffered']
    %8 = vsyncpa [#allocation3], 0
    %9 = vsyncpa [#allocation6], 0
    %10 = vsyncpa [#allocation4], 0
    // Predicated region
    $region2: #{tpu_custom_call.1} parent=1 // pred_check
      _
    $region3: #{tpu_custom_call.1} parent=1 // pred_check_branch
      %12 = sbr.rel (0) target = $region5
    $region4: #{tpu_custom_call.1} parent=1 // pred_region
      %s14 = ssub.s32 256, 256
      %15 = vsyncadd [#allocation3], %s14
      %s16 = sshll.u32 [#allocation2], 4
      %s17 = int_to_ptr.vmem [resolvable:$true] %s16
      %22 = dma.hbm_to_vmem [thread:$0]  %s0, 256, %s17, [#allocation3], 128, 128, 8
    $region5: #{tpu_custom_call.1} parent=1 // pred_fallthru
      _
    // Predicated region
    $region6: #{tpu_custom_call.1} parent=1 // pred_check
      _
    $region7: #{tpu_custom_call.1} parent=1 // pred_check_branch
      %24 = sbr.rel (0) target = $region9
    $region8: #{tpu_custom_call.1} parent=1 // pred_region
      %s26 = ssub.s32 256, 256
      %27 = vsyncadd [#allocation6], %s26
      %s28 = sshll.u32 [#allocation5], 4
      %s29 = int_to_ptr.vmem [resolvable:$true] %s28
      %34 = dma.hbm_to_vmem [thread:$0]  %s1, 256, %s29, [#allocation6], 128, 128, 8
    $region9: #{tpu_custom_call.1} parent=1 // pred_fallthru
      _
    // Predicated region
    $region10: #{tpu_custom_call.1} parent=1 // pred_check
      _
    $region11: #{tpu_custom_call.1} parent=1 // pred_check_branch
      %36 = sbr.rel (0) target = $region13
    $region12: #{tpu_custom_call.1} parent=1 // pred_region
      %s38 = ssub.s32 256, 256
      %39 = vsyncadd [#allocation6], %s38
      %s40 = sshll.u32 [#allocation7], 4
      %s41 = int_to_ptr.vmem [resolvable:$true] %s40
      %46 = dma.hbm_to_vmem [thread:$0]  %s2, 256, %s41, [#allocation6], 128, 128, 8
    $region13: #{tpu_custom_call.1} parent=1 // pred_fallthru
      _
    // Predicated region
    $region14: #{tpu_custom_call.1} parent=1 // pred_check
      _
    $region15: #{tpu_custom_call.1} parent=1 // pred_check_branch
      %48 = sbr.rel (0) target = $region17
    $region16: #{tpu_custom_call.1} parent=1 // pred_region
      %49 = dma.done [#allocation3], 256
    $region17: #{tpu_custom_call.1} parent=1 // pred_fallthru
      _
    // Predicated region
    $region18: #{tpu_custom_call.1} parent=1 // pred_check
      _
    $region19: #{tpu_custom_call.1} parent=1 // pred_check_branch
      %51 = sbr.rel (0) target = $region21
    $region20: #{tpu_custom_call.1} parent=1 // pred_region
      %52 = dma.done [#allocation6], 256
    $region21: #{tpu_custom_call.1} parent=1 // pred_fallthru
      _
    // Predicated region
    $region22: #{tpu_custom_call.1} parent=1 // pred_check
      _
    $region23: #{tpu_custom_call.1} parent=1 // pred_check_branch
      %54 = sbr.rel (0) target = $region25
    $region24: #{tpu_custom_call.1} parent=1 // pred_region
      %55 = dma.done [#allocation6], 256
    $region25: #{tpu_custom_call.1} parent=1 // pred_fallthru
      _
    %v56 = vld [vmem:[#allocation2] sm:$0xff]
    %v57 = vld [vmem:[#allocation2 + $0x8] sm:$0xff]
    %v58 = vld [vmem:[#allocation5] sm:$0xff]
    %v59 = vld [vmem:[#allocation5 + $0x8] sm:$0xff]
    %vm60 = vcmask 261120
    %v62 = vsel %vm60, %v56, 0
    %v65 = vsel %vm60, %v58, 0
    %67 = vmatprep.subr.mxu0 0.0
    %68 = vmatpush1.xpose.msra.mxu0 0.0
    %69 = vmatprep.subr.mxu0 0.0
    %70 = vmatpush1.xpose.msra.mxu0 0.0
    %71 = vmatprep.subr.mxu0 0.0
    %72 = vmatpush1.xpose.msra.mxu0 0.0
    %73 = vmatprep.subr.mxu0 0.0
    %74 = vmatpush1.xpose.msra.mxu0 0.0
    %75 = vmatprep.subr.mxu0 0.0
    %76 = vmatpush1.xpose.msra.mxu0 0.0
    %77 = vmatprep.subr.mxu0 0.0
    %78 = vmatpush1.xpose.msra.mxu0 0.0
    %79 = vmatprep.subr.mxu0 0.0
    %80 = vmatpush1.xpose.msra.mxu0 0.0
    %81 = vmatprep.subr.mxu0 0.0
    %82 = vmatpush1.xpose.msra.mxu0 0.0
    %83 = vmatprep.subr.mxu0 0.0
    %84 = vmatpush1.xpose.msra.mxu0 0.0
    %85 = vmatprep.subr.mxu0 0.0
    %86 = vmatpush1.xpose.msra.mxu0 0.0
    %87 = vmatprep.subr.mxu0 0.0
    %88 = vmatpush1.xpose.msra.mxu0 0.0
    %89 = vmatprep.subr.mxu0 0.0
    %90 = vmatpush1.xpose.msra.mxu0 0.0
    %91 = vmatprep.subr.mxu0 0.0
    %92 = vmatpush1.xpose.msra.mxu0 0.0
    %93 = vmatprep.subr.mxu0 0.0
    %94 = vmatpush1.xpose.msra.mxu0 0.0
    %95 = vmatprep.subr.mxu0 0.0
    %96 = vmatpush1.xpose.msra.mxu0 0.0
    %97 = vmatprep.subr.mxu0 0.0
    %98 = vmatpush1.xpose.msra.mxu0 %v65
    %99 = vmatprep.subr.mxu0 0.0
    %100 = vmatpush2.xpose.msra.mxu0 0.0
    %101 = vmatprep.subr.mxu0 0.0
    %102 = vmatpush2.xpose.msra.mxu0 0.0
    %103 = vmatprep.subr.mxu0 0.0
    %104 = vmatpush2.xpose.msra.mxu0 0.0
    %105 = vmatprep.subr.mxu0 0.0
    %106 = vmatpush2.xpose.msra.mxu0 0.0
    %107 = vmatprep.subr.mxu0 0.0
    %108 = vmatpush2.xpose.msra.mxu0 0.0
    %109 = vmatprep.subr.mxu0 0.0
    %110 = vmatpush2.xpose.msra.mxu0 0.0
    %111 = vmatprep.subr.mxu0 0.0
    %112 = vmatpush2.xpose.msra.mxu0 0.0
    %113 = vmatprep.subr.mxu0 0.0
    %114 = vmatpush2.xpose.msra.mxu0 0.0
    %115 = vmatprep.subr.mxu0 0.0
    %116 = vmatpush2.xpose.msra.mxu0 0.0
    %117 = vmatprep.subr.mxu0 0.0
    %118 = vmatpush2.xpose.msra.mxu0 0.0
    %119 = vmatprep.subr.mxu0 0.0
    %120 = vmatpush2.xpose.msra.mxu0 0.0
    %121 = vmatprep.subr.mxu0 0.0
    %122 = vmatpush2.xpose.msra.mxu0 0.0
    %123 = vmatprep.subr.mxu0 0.0
    %124 = vmatpush2.xpose.msra.mxu0 0.0
    %125 = vmatprep.subr.mxu0 0.0
    %126 = vmatpush2.xpose.msra.mxu0 0.0
    %127 = vmatprep.subr.mxu0 0.0
    %128 = vmatpush2.xpose.msra.mxu0 0.0
    %129 = vmatprep.subr.mxu0 0.0
    %130 = vmatpush2.xpose.msra.mxu0 0.0
    %131 = vmatprep.mubr.f32.mxu0 0.0
    %132 = vmatmul.mubr.f32.gmra.mxu0 %v62
    %v133 = vpop.f32.mrf.mxu0
    %v134 = vadd.f32 0.0, %v133
    %v135 = vpop.f32.mrf.mxu0
    %136 = vdwg.mxu0
    %v138 = vsel %vm60, %v57, 0
    %v141 = vsel %vm60, %v59, 0
    %143 = vmatprep.subr.mxu0 0.0
    %144 = vmatpush1.xpose.msra.mxu0 0.0
    %145 = vmatprep.subr.mxu0 0.0
    %146 = vmatpush1.xpose.msra.mxu0 0.0
    %147 = vmatprep.subr.mxu0 0.0
    %148 = vmatpush1.xpose.msra.mxu0 0.0
    %149 = vmatprep.subr.mxu0 0.0
    %150 = vmatpush1.xpose.msra.mxu0 0.0
    %151 = vmatprep.subr.mxu0 0.0
    %152 = vmatpush1.xpose.msra.mxu0 0.0
    %153 = vmatprep.subr.mxu0 0.0
    %154 = vmatpush1.xpose.msra.mxu0 0.0
    %155 = vmatprep.subr.mxu0 0.0
    %156 = vmatpush1.xpose.msra.mxu0 0.0
    %157 = vmatprep.subr.mxu0 0.0
    %158 = vmatpush1.xpose.msra.mxu0 0.0
    %159 = vmatprep.subr.mxu0 0.0
    %160 = vmatpush1.xpose.msra.mxu0 0.0
    %161 = vmatprep.subr.mxu0 0.0
    %162 = vmatpush1.xpose.msra.mxu0 0.0
    %163 = vmatprep.subr.mxu0 0.0
    %164 = vmatpush1.xpose.msra.mxu0 0.0
    %165 = vmatprep.subr.mxu0 0.0
    %166 = vmatpush1.xpose.msra.mxu0 0.0
    %167 = vmatprep.subr.mxu0 0.0
    %168 = vmatpush1.xpose.msra.mxu0 0.0
    %169 = vmatprep.subr.mxu0 0.0
    %170 = vmatpush1.xpose.msra.mxu0 0.0
    %171 = vmatprep.subr.mxu0 0.0
    %172 = vmatpush1.xpose.msra.mxu0 0.0
    %173 = vmatprep.subr.mxu0 0.0
    %174 = vmatpush1.xpose.msra.mxu0 %v141
    %175 = vmatprep.subr.mxu0 0.0
    %176 = vmatpush2.xpose.msra.mxu0 0.0
    %177 = vmatprep.subr.mxu0 0.0
    %178 = vmatpush2.xpose.msra.mxu0 0.0
    %179 = vmatprep.subr.mxu0 0.0
    %180 = vmatpush2.xpose.msra.mxu0 0.0
    %181 = vmatprep.subr.mxu0 0.0
    %182 = vmatpush2.xpose.msra.mxu0 0.0
    %183 = vmatprep.subr.mxu0 0.0
    %184 = vmatpush2.xpose.msra.mxu0 0.0
    %185 = vmatprep.subr.mxu0 0.0
    %186 = vmatpush2.xpose.msra.mxu0 0.0
    %187 = vmatprep.subr.mxu0 0.0
    %188 = vmatpush2.xpose.msra.mxu0 0.0
    %189 = vmatprep.subr.mxu0 0.0
    %190 = vmatpush2.xpose.msra.mxu0 0.0
    %191 = vmatprep.subr.mxu0 0.0
    %192 = vmatpush2.xpose.msra.mxu0 0.0
    %193 = vmatprep.subr.mxu0 0.0
    %194 = vmatpush2.xpose.msra.mxu0 0.0
    %195 = vmatprep.subr.mxu0 0.0
    %196 = vmatpush2.xpose.msra.mxu0 0.0
    %197 = vmatprep.subr.mxu0 0.0
    %198 = vmatpush2.xpose.msra.mxu0 0.0
    %199 = vmatprep.subr.mxu0 0.0
    %200 = vmatpush2.xpose.msra.mxu0 0.0
    %201 = vmatprep.subr.mxu0 0.0
    %202 = vmatpush2.xpose.msra.mxu0 0.0
    %203 = vmatprep.subr.mxu0 0.0
    %204 = vmatpush2.xpose.msra.mxu0 0.0
    %205 = vmatprep.subr.mxu0 0.0
    %206 = vmatpush2.xpose.msra.mxu0 0.0
    %207 = vmatprep.mubr.f32.mxu0 0.0
    %208 = vmatmul.mubr.f32.gmra.mxu0 %v138
    %v209 = vpop.f32.mrf.mxu0
    %v210 = vadd.f32 0.0, %v209
    %v211 = vpop.f32.mrf.mxu0
    %212 = vdwg.mxu0
    %v213 = vmul.f32 %v134, 0.5
    %v214 = vmul.f32 %v210, 0.5
    %v215 = vmax.f32 %v213, 0.0
    %v216 = vmax.f32 %v214, 0.0
    %v217 = vld [vmem:[#allocation7] sm:$0xff]
    %v218 = vld [vmem:[#allocation7 + $0x8] sm:$0xff]
    %v219 = vadd.f32 %v217, 1e-06
    %v220 = vadd.f32 %v218, 1e-06
    %v221 = vlog2.pop %v219
    %v222 = vmul.f32 %v221, 0.6931472
    %v223 = vlog2.pop %v220
    %v224 = vmul.f32 %v223, 0.6931472
    %v225 = vsub.f32 0.0, %v222
    %v226 = vsub.f32 0.0, %v224
    %v227 = vadd.f32 %v225, 1e-06
    %v228 = vadd.f32 %v226, 1e-06
    %v229 = vlog2.pop %v227
    %v230 = vmul.f32 %v229, 0.6931472
    %v231 = vlog2.pop %v228
    %v232 = vmul.f32 %v231, 0.6931472
    %v233 = vsub.f32 0.0, %v230
    %v234 = vsub.f32 0.0, %v232
    %v235 = vlog2.pop %v215
    %v236 = vmul.f32 %v235, 0.6931472
    %v237 = vlog2.pop %v216
    %v238 = vmul.f32 %v237, 0.6931472
    %v239 = vadd.f32 %v236, %v233
    %v240 = vadd.f32 %v238, %v234
    %v241 = vmul.f32 %v239, 142.85715
    %v242 = vmul.f32 %v240, 142.85715
    %v243 = vmax.f32 %v241, -1e+30
    %v244 = vmax.f32 %v242, -1e+30
    %vm245 = vcmask 64512
    %v246 = vsel %vm245, %v243, -inf
    %247 = vmax.xlane.f32.xlu0 %v246
    %v248 = vpop.xlane.xlu0 %247
    %v249 = vsel %vm245, %v244, -inf
    %250 = vmax.xlane.f32.xlu0 %v249
    %v251 = vpop.xlane.xlu0 %250
    %v252 = vsub.f32 %v243, %v248
    %v253 = vsub.f32 %v244, %v251
    %v254 = vmul.f32 %v252, 1.442695
    %v255 = vpow.pop %v254
    %v256 = vmul.f32 %v253, 1.442695
    %v257 = vpow.pop %v256
    %v258 = vsel %vm245, %v255, 0.0
    %259 = vadd.xlane.f32.xlu0 %v258
    %v260 = vpop.xlane.xlu0 %259
    %v261 = vsel %vm245, %v257, 0.0
    %262 = vadd.xlane.f32.xlu0 %v261
    %v263 = vpop.xlane.xlu0 %262
    %v264 = vlog2.pop %v260
    %v265 = vmul.f32 %v264, 0.6931472
    %v266 = vlog2.pop %v263
    %v267 = vmul.f32 %v266, 0.6931472
    %v268 = vadd.f32 %v265, %v248
    %v269 = vadd.f32 %v267, %v251
    %v270 = vsub.f32 %v243, %v268
    %v271 = vsub.f32 %v244, %v269
    %v272 = vsel %vm245, %v270, -inf
    %v273 = vrot.slane %v272, 4
    %v274 = vmax.f32 %v272, %v273
    %v275 = vrot.slane %v274, 2
    %v276 = vmax.f32 %v274, %v275
    %v277 = vrot.slane %v276, 1
    %v278 = vmax.f32 %v276, %v277
    %v279 = vsel %vm245, %v271, -inf
    %v280 = vrot.slane %v279, 4
    %v281 = vmax.f32 %v279, %v280
    %v282 = vrot.slane %v281, 2
    %v283 = vmax.f32 %v281, %v282
    %v284 = vrot.slane %v283, 1
    %v285 = vmax.f32 %v283, %v284
    %v286 = vsub.f32 %v270, %v278
    %v287 = vsub.f32 %v271, %v285
    %v288 = vmul.f32 %v286, 1.442695
    %v289 = vpow.pop %v288
    %v290 = vmul.f32 %v287, 1.442695
    %v291 = vpow.pop %v290
    %v292 = vsel %vm245, %v289, 0.0
    %v293 = vrot.slane %v292, 4
    %v294 = vadd.f32 %v292, %v293
    %v295 = vrot.slane %v294, 2
    %v296 = vadd.f32 %v294, %v295
    %v297 = vrot.slane %v296, 1
    %v298 = vadd.f32 %v296, %v297
    %v299 = vsel %vm245, %v291, 0.0
    %v300 = vrot.slane %v299, 4
    %v301 = vadd.f32 %v299, %v300
    %v302 = vrot.slane %v301, 2
    %v303 = vadd.f32 %v301, %v302
    %v304 = vrot.slane %v303, 1
    %v305 = vadd.f32 %v303, %v304
    %v306 = vlog2.pop %v298
    %v307 = vmul.f32 %v306, 0.6931472
    %v308 = vlog2.pop %v305
    %v309 = vmul.f32 %v308, 0.6931472
    %v310 = vadd.f32 %v307, %v278
    %v311 = vadd.f32 %v309, %v285
    %v312 = vsub.f32 %v270, %v310
    %v313 = vsub.f32 %v271, %v311
    %v314 = vsel %vm245, %v312, -inf
    %315 = vmax.xlane.f32.xlu0 %v314
    %v316 = vpop.xlane.xlu0 %315
    %v317 = vsel %vm245, %v313, -inf
    %318 = vmax.xlane.f32.xlu0 %v317
    %v319 = vpop.xlane.xlu0 %318
    %v320 = vsub.f32 %v312, %v316
    %v321 = vsub.f32 %v313, %v319
    %v322 = vmul.f32 %v320, 1.442695
    %v323 = vpow.pop %v322
    %v324 = vmul.f32 %v321, 1.442695
    %v325 = vpow.pop %v324
    %v326 = vsel %vm245, %v323, 0.0
    %327 = vadd.xlane.f32.xlu0 %v326
    %v328 = vpop.xlane.xlu0 %327
    %v329 = vsel %vm245, %v325, 0.0
    %330 = vadd.xlane.f32.xlu0 %v329
    %v331 = vpop.xlane.xlu0 %330
    %v332 = vlog2.pop %v328
    %v333 = vmul.f32 %v332, 0.6931472
    %v334 = vlog2.pop %v331
    %v335 = vmul.f32 %v334, 0.6931472
    %v336 = vadd.f32 %v333, %v316
    %v337 = vadd.f32 %v335, %v319
    %v338 = vsub.f32 %v312, %v336
    %v339 = vsub.f32 %v313, %v337
    %v340 = vsel %vm245, %v338, -inf
    %v341 = vrot.slane %v340, 4
    %v342 = vmax.f32 %v340, %v341
    %v343 = vrot.slane %v342, 2
    %v344 = vmax.f32 %v342, %v343
    %v345 = vrot.slane %v344, 1
    %v346 = vmax.f32 %v344, %v345
    %v347 = vsel %vm245, %v339, -inf
    %v348 = vrot.slane %v347, 4
    %v349 = vmax.f32 %v347, %v348
    %v350 = vrot.slane %v349, 2
    %v351 = vmax.f32 %v349, %v350
    %v352 = vrot.slane %v351, 1
    %v353 = vmax.f32 %v351, %v352
    %v354 = vsub.f32 %v338, %v346
    %v355 = vsub.f32 %v339, %v353
    %v356 = vmul.f32 %v354, 1.442695
    %v357 = vpow.pop %v356
    %v358 = vmul.f32 %v355, 1.442695
    %v359 = vpow.pop %v358
    %v360 = vsel %vm245, %v357, 0.0
    %v361 = vrot.slane %v360, 4
    %v362 = vadd.f32 %v360, %v361
    %v363 = vrot.slane %v362, 2
    %v364 = vadd.f32 %v362, %v363
    %v365 = vrot.slane %v364, 1
    %v366 = vadd.f32 %v364, %v365
    %v367 = vsel %vm245, %v359, 0.0
    %v368 = vrot.slane %v367, 4
    %v369 = vadd.f32 %v367, %v368
    %v370 = vrot.slane %v369, 2
    %v371 = vadd.f32 %v369, %v370
    %v372 = vrot.slane %v371, 1
    %v373 = vadd.f32 %v371, %v372
    %v374 = vlog2.pop %v366
    %v375 = vmul.f32 %v374, 0.6931472
    %v376 = vlog2.pop %v373
    %v377 = vmul.f32 %v376, 0.6931472
    %v378 = vadd.f32 %v375, %v346
    %v379 = vadd.f32 %v377, %v353
    %v380 = vsub.f32 %v338, %v378
    %v381 = vsub.f32 %v339, %v379
    %v382 = vsel %vm245, %v380, -inf
    %383 = vmax.xlane.f32.xlu0 %v382
    %v384 = vpop.xlane.xlu0 %383
    %v385 = vsel %vm245, %v381, -inf
    %386 = vmax.xlane.f32.xlu0 %v385
    %v387 = vpop.xlane.xlu0 %386
    %v388 = vsub.f32 %v380, %v384
    %v389 = vsub.f32 %v381, %v387
    %v390 = vmul.f32 %v388, 1.442695
    %v391 = vpow.pop %v390
    %v392 = vmul.f32 %v389, 1.442695
    %v393 = vpow.pop %v392
    %v394 = vsel %vm245, %v391, 0.0
    %395 = vadd.xlane.f32.xlu0 %v394
    %v396 = vpop.xlane.xlu0 %395
    %v397 = vsel %vm245, %v393, 0.0
    %398 = vadd.xlane.f32.xlu0 %v397
    %v399 = vpop.xlane.xlu0 %398
    %v400 = vlog2.pop %v396
    %v401 = vmul.f32 %v400, 0.6931472
    %v402 = vlog2.pop %v399
    %v403 = vmul.f32 %v402, 0.6931472
    %v404 = vadd.f32 %v401, %v384
    %v405 = vadd.f32 %v403, %v387
    %v406 = vsub.f32 %v380, %v404
    %v407 = vsub.f32 %v381, %v405
    %v408 = vsel %vm245, %v406, -inf
    %v409 = vrot.slane %v408, 4
    %v410 = vmax.f32 %v408, %v409
    %v411 = vrot.slane %v410, 2
    %v412 = vmax.f32 %v410, %v411
    %v413 = vrot.slane %v412, 1
    %v414 = vmax.f32 %v412, %v413
    %v415 = vsel %vm245, %v407, -inf
    %v416 = vrot.slane %v415, 4
    %v417 = vmax.f32 %v415, %v416
    %v418 = vrot.slane %v417, 2
    %v419 = vmax.f32 %v417, %v418
    %v420 = vrot.slane %v419, 1
    %v421 = vmax.f32 %v419, %v420
    %v422 = vsub.f32 %v406, %v414
    %v423 = vsub.f32 %v407, %v421
    %v424 = vmul.f32 %v422, 1.442695
    %v425 = vpow.pop %v424
    %v426 = vmul.f32 %v423, 1.442695
    %v427 = vpow.pop %v426
    %v428 = vsel %vm245, %v425, 0.0
    %v429 = vrot.slane %v428, 4
    %v430 = vadd.f32 %v428, %v429
    %v431 = vrot.slane %v430, 2
    %v432 = vadd.f32 %v430, %v431
    %v433 = vrot.slane %v432, 1
    %v434 = vadd.f32 %v432, %v433
    %v435 = vsel %vm245, %v427, 0.0
    %v436 = vrot.slane %v435, 4
    %v437 = vadd.f32 %v435, %v436
    %v438 = vrot.slane %v437, 2
    %v439 = vadd.f32 %v437, %v438
    %v440 = vrot.slane %v439, 1
    %v441 = vadd.f32 %v439, %v440
    %v442 = vlog2.pop %v434
    %v443 = vmul.f32 %v442, 0.6931472
    %v444 = vlog2.pop %v441
    %v445 = vmul.f32 %v444, 0.6931472
    %v446 = vadd.f32 %v443, %v414
    %v447 = vadd.f32 %v445, %v421
    %v448 = vsub.f32 %v406, %v446
    %v449 = vsub.f32 %v407, %v447
    %v450 = vsel %vm245, %v448, -inf
    %451 = vmax.xlane.f32.xlu0 %v450
    %v452 = vpop.xlane.xlu0 %451
    %v453 = vsel %vm245, %v449, -inf
    %454 = vmax.xlane.f32.xlu0 %v453
    %v455 = vpop.xlane.xlu0 %454
    %v456 = vsub.f32 %v448, %v452
    %v457 = vsub.f32 %v449, %v455
    %v458 = vmul.f32 %v456, 1.442695
    %v459 = vpow.pop %v458
    %v460 = vmul.f32 %v457, 1.442695
    %v461 = vpow.pop %v460
    %v462 = vsel %vm245, %v459, 0.0
    %463 = vadd.xlane.f32.xlu0 %v462
    %v464 = vpop.xlane.xlu0 %463
    %v465 = vsel %vm245, %v461, 0.0
    %466 = vadd.xlane.f32.xlu0 %v465
    %v467 = vpop.xlane.xlu0 %466
    %v468 = vlog2.pop %v464
    %v469 = vmul.f32 %v468, 0.6931472
    %v470 = vlog2.pop %v467
    %v471 = vmul.f32 %v470, 0.6931472
    %v472 = vadd.f32 %v469, %v452
    %v473 = vadd.f32 %v471, %v455
    %v474 = vsub.f32 %v448, %v472
    %v475 = vsub.f32 %v449, %v473
    %v476 = vsel %vm245, %v474, -inf
    %v477 = vrot.slane %v476, 4
    %v478 = vmax.f32 %v476, %v477
    %v479 = vrot.slane %v478, 2
    %v480 = vmax.f32 %v478, %v479
    %v481 = vrot.slane %v480, 1
    %v482 = vmax.f32 %v480, %v481
    %v483 = vsel %vm245, %v475, -inf
    %v484 = vrot.slane %v483, 4
    %v485 = vmax.f32 %v483, %v484
    %v486 = vrot.slane %v485, 2
    %v487 = vmax.f32 %v485, %v486
    %v488 = vrot.slane %v487, 1
    %v489 = vmax.f32 %v487, %v488
    %v490 = vsub.f32 %v474, %v482
    %v491 = vsub.f32 %v475, %v489
    %v492 = vmul.f32 %v490, 1.442695
    %v493 = vpow.pop %v492
    %v494 = vmul.f32 %v491, 1.442695
    %v495 = vpow.pop %v494
    %v496 = vsel %vm245, %v493, 0.0
    %v497 = vrot.slane %v496, 4
    %v498 = vadd.f32 %v496, %v497
    %v499 = vrot.slane %v498, 2
    %v500 = vadd.f32 %v498, %v499
    %v501 = vrot.slane %v500, 1
    %v502 = vadd.f32 %v500, %v501
    %v503 = vsel %vm245, %v495, 0.0
    %v504 = vrot.slane %v503, 4
    %v505 = vadd.f32 %v503, %v504
    %v506 = vrot.slane %v505, 2
    %v507 = vadd.f32 %v505, %v506
    %v508 = vrot.slane %v507, 1
    %v509 = vadd.f32 %v507, %v508
    %v510 = vlog2.pop %v502
    %v511 = vmul.f32 %v510, 0.6931472
    %v512 = vlog2.pop %v509
    %v513 = vmul.f32 %v512, 0.6931472
    %v514 = vadd.f32 %v511, %v482
    %v515 = vadd.f32 %v513, %v489
    %v516 = vsub.f32 %v474, %v514
    %v517 = vsub.f32 %v475, %v515
    %v518 = vsel %vm245, %v516, -inf
    %519 = vmax.xlane.f32.xlu0 %v518
    %v520 = vpop.xlane.xlu0 %519
    %v521 = vsel %vm245, %v517, -inf
    %522 = vmax.xlane.f32.xlu0 %v521
    %v523 = vpop.xlane.xlu0 %522
    %v524 = vsub.f32 %v516, %v520
    %v525 = vsub.f32 %v517, %v523
    %v526 = vmul.f32 %v524, 1.442695
    %v527 = vpow.pop %v526
    %v528 = vmul.f32 %v525, 1.442695
    %v529 = vpow.pop %v528
    %v530 = vsel %vm245, %v527, 0.0
    %531 = vadd.xlane.f32.xlu0 %v530
    %v532 = vpop.xlane.xlu0 %531
    %v533 = vsel %vm245, %v529, 0.0
    %534 = vadd.xlane.f32.xlu0 %v533
    %v535 = vpop.xlane.xlu0 %534
    %v536 = vlog2.pop %v532
    %v537 = vmul.f32 %v536, 0.6931472
    %v538 = vlog2.pop %v535
    %v539 = vmul.f32 %v538, 0.6931472
    %v540 = vadd.f32 %v537, %v520
    %v541 = vadd.f32 %v539, %v523
    %v542 = vsub.f32 %v516, %v540
    %v543 = vsub.f32 %v517, %v541
    %v544 = vsel %vm245, %v542, -inf
    %v545 = vrot.slane %v544, 4
    %v546 = vmax.f32 %v544, %v545
    %v547 = vrot.slane %v546, 2
    %v548 = vmax.f32 %v546, %v547
    %v549 = vrot.slane %v548, 1
    %v550 = vmax.f32 %v548, %v549
    %v551 = vsel %vm245, %v543, -inf
    %v552 = vrot.slane %v551, 4
    %v553 = vmax.f32 %v551, %v552
    %v554 = vrot.slane %v553, 2
    %v555 = vmax.f32 %v553, %v554
    %v556 = vrot.slane %v555, 1
    %v557 = vmax.f32 %v555, %v556
    %v558 = vsub.f32 %v542, %v550
    %v559 = vsub.f32 %v543, %v557
    %v560 = vmul.f32 %v558, 1.442695
    %v561 = vpow.pop %v560
    %v562 = vmul.f32 %v559, 1.442695
    %v563 = vpow.pop %v562
    %v564 = vsel %vm245, %v561, 0.0
    %v565 = vrot.slane %v564, 4
    %v566 = vadd.f32 %v564, %v565
    %v567 = vrot.slane %v566, 2
    %v568 = vadd.f32 %v566, %v567
    %v569 = vrot.slane %v568, 1
    %v570 = vadd.f32 %v568, %v569
    %v571 = vsel %vm245, %v563, 0.0
    %v572 = vrot.slane %v571, 4
    %v573 = vadd.f32 %v571, %v572
    %v574 = vrot.slane %v573, 2
    %v575 = vadd.f32 %v573, %v574
    %v576 = vrot.slane %v575, 1
    %v577 = vadd.f32 %v575, %v576
    %v578 = vlog2.pop %v570
    %v579 = vmul.f32 %v578, 0.6931472
    %v580 = vlog2.pop %v577
    %v581 = vmul.f32 %v580, 0.6931472
    %v582 = vadd.f32 %v579, %v550
    %v583 = vadd.f32 %v581, %v557
    %v584 = vsub.f32 %v542, %v582
    %v585 = vsub.f32 %v543, %v583
    %v586 = vsel %vm245, %v584, -inf
    %587 = vmax.xlane.f32.xlu0 %v586
    %v588 = vpop.xlane.xlu0 %587
    %v589 = vsel %vm245, %v585, -inf
    %590 = vmax.xlane.f32.xlu0 %v589
    %v591 = vpop.xlane.xlu0 %590
    %v592 = vsub.f32 %v584, %v588
    %v593 = vsub.f32 %v585, %v591
    %v594 = vmul.f32 %v592, 1.442695
    %v595 = vpow.pop %v594
    %v596 = vmul.f32 %v593, 1.442695
    %v597 = vpow.pop %v596
    %v598 = vsel %vm245, %v595, 0.0
    %599 = vadd.xlane.f32.xlu0 %v598
    %v600 = vpop.xlane.xlu0 %599
    %v601 = vsel %vm245, %v597, 0.0
    %602 = vadd.xlane.f32.xlu0 %v601
    %v603 = vpop.xlane.xlu0 %602
    %v604 = vlog2.pop %v600
    %v605 = vmul.f32 %v604, 0.6931472
    %v606 = vlog2.pop %v603
    %v607 = vmul.f32 %v606, 0.6931472
    %v608 = vadd.f32 %v605, %v588
    %v609 = vadd.f32 %v607, %v591
    %v610 = vsub.f32 %v584, %v608
    %v611 = vsub.f32 %v585, %v609
    %v612 = vsel %vm245, %v610, -inf
    %v613 = vrot.slane %v612, 4
    %v614 = vmax.f32 %v612, %v613
    %v615 = vrot.slane %v614, 2
    %v616 = vmax.f32 %v614, %v615
    %v617 = vrot.slane %v616, 1
    %v618 = vmax.f32 %v616, %v617
    %v619 = vsel %vm245, %v611, -inf
    %v620 = vrot.slane %v619, 4
    %v621 = vmax.f32 %v619, %v620
    %v622 = vrot.slane %v621, 2
    %v623 = vmax.f32 %v621, %v622
    %v624 = vrot.slane %v623, 1
    %v625 = vmax.f32 %v623, %v624
    %v626 = vsub.f32 %v610, %v618
    %v627 = vsub.f32 %v611, %v625
    %v628 = vmul.f32 %v626, 1.442695
    %v629 = vpow.pop %v628
    %v630 = vmul.f32 %v627, 1.442695
    %v631 = vpow.pop %v630
    %v632 = vsel %vm245, %v629, 0.0
    %v633 = vrot.slane %v632, 4
    %v634 = vadd.f32 %v632, %v633
    %v635 = vrot.slane %v634, 2
    %v636 = vadd.f32 %v634, %v635
    %v637 = vrot.slane %v636, 1
    %v638 = vadd.f32 %v636, %v637
    %v639 = vsel %vm245, %v631, 0.0
    %v640 = vrot.slane %v639, 4
    %v641 = vadd.f32 %v639, %v640
    %v642 = vrot.slane %v641, 2
    %v643 = vadd.f32 %v641, %v642
    %v644 = vrot.slane %v643, 1
    %v645 = vadd.f32 %v643, %v644
    %v646 = vlog2.pop %v638
    %v647 = vmul.f32 %v646, 0.6931472
    %v648 = vlog2.pop %v645
    %v649 = vmul.f32 %v648, 0.6931472
    %v650 = vadd.f32 %v647, %v618
    %v651 = vadd.f32 %v649, %v625
    %v652 = vsub.f32 %v610, %v650
    %v653 = vsub.f32 %v611, %v651
    %v654 = vsel %vm245, %v652, -inf
    %655 = vmax.xlane.f32.xlu0 %v654
    %v656 = vpop.xlane.xlu0 %655
    %v657 = vsel %vm245, %v653, -inf
    %658 = vmax.xlane.f32.xlu0 %v657
    %v659 = vpop.xlane.xlu0 %658
    %v660 = vsub.f32 %v652, %v656
    %v661 = vsub.f32 %v653, %v659
    %v662 = vmul.f32 %v660, 1.442695
    %v663 = vpow.pop %v662
    %v664 = vmul.f32 %v661, 1.442695
    %v665 = vpow.pop %v664
    %v666 = vsel %vm245, %v663, 0.0
    %667 = vadd.xlane.f32.xlu0 %v666
    %v668 = vpop.xlane.xlu0 %667
    %v669 = vsel %vm245, %v665, 0.0
    %670 = vadd.xlane.f32.xlu0 %v669
    %v671 = vpop.xlane.xlu0 %670
    %v672 = vlog2.pop %v668
    %v673 = vmul.f32 %v672, 0.6931472
    %v674 = vlog2.pop %v671
    %v675 = vmul.f32 %v674, 0.6931472
    %v676 = vadd.f32 %v673, %v656
    %v677 = vadd.f32 %v675, %v659
    %v678 = vsub.f32 %v652, %v676
    %v679 = vsub.f32 %v653, %v677
    %v680 = vsel %vm245, %v678, -inf
    %v681 = vrot.slane %v680, 4
    %v682 = vmax.f32 %v680, %v681
    %v683 = vrot.slane %v682, 2
    %v684 = vmax.f32 %v682, %v683
    %v685 = vrot.slane %v684, 1
    %v686 = vmax.f32 %v684, %v685
    %v687 = vsel %vm245, %v679, -inf
    %v688 = vrot.slane %v687, 4
    %v689 = vmax.f32 %v687, %v688
    %v690 = vrot.slane %v689, 2
    %v691 = vmax.f32 %v689, %v690
    %v692 = vrot.slane %v691, 1
    %v693 = vmax.f32 %v691, %v692
    %v694 = vsub.f32 %v678, %v686
    %v695 = vsub.f32 %v679, %v693
    %v696 = vmul.f32 %v694, 1.442695
    %v697 = vpow.pop %v696
    %v698 = vmul.f32 %v695, 1.442695
    %v699 = vpow.pop %v698
    %v700 = vsel %vm245, %v697, 0.0
    %v701 = vrot.slane %v700, 4
    %v702 = vadd.f32 %v700, %v701
    %v703 = vrot.slane %v702, 2
    %v704 = vadd.f32 %v702, %v703
    %v705 = vrot.slane %v704, 1
    %v706 = vadd.f32 %v704, %v705
    %v707 = vsel %vm245, %v699, 0.0
    %v708 = vrot.slane %v707, 4
    %v709 = vadd.f32 %v707, %v708
    %v710 = vrot.slane %v709, 2
    %v711 = vadd.f32 %v709, %v710
    %v712 = vrot.slane %v711, 1
    %v713 = vadd.f32 %v711, %v712
    %v714 = vlog2.pop %v706
    %v715 = vmul.f32 %v714, 0.6931472
    %v716 = vlog2.pop %v713
    %v717 = vmul.f32 %v716, 0.6931472
    %v718 = vadd.f32 %v715, %v686
    %v719 = vadd.f32 %v717, %v693
    %v720 = vsub.f32 %v678, %v718
    %v721 = vsub.f32 %v679, %v719
    %v722 = vsel %vm245, %v720, -inf
    %723 = vmax.xlane.f32.xlu0 %v722
    %v724 = vpop.xlane.xlu0 %723
    %v725 = vsel %vm245, %v721, -inf
    %726 = vmax.xlane.f32.xlu0 %v725
    %v727 = vpop.xlane.xlu0 %726
    %v728 = vsub.f32 %v720, %v724
    %v729 = vsub.f32 %v721, %v727
    %v730 = vmul.f32 %v728, 1.442695
    %v731 = vpow.pop %v730
    %v732 = vmul.f32 %v729, 1.442695
    %v733 = vpow.pop %v732
    %v734 = vsel %vm245, %v731, 0.0
    %735 = vadd.xlane.f32.xlu0 %v734
    %v736 = vpop.xlane.xlu0 %735
    %v737 = vsel %vm245, %v733, 0.0
    %738 = vadd.xlane.f32.xlu0 %v737
    %v739 = vpop.xlane.xlu0 %738
    %v740 = vlog2.pop %v736
    %v741 = vmul.f32 %v740, 0.6931472
    %v742 = vlog2.pop %v739
    %v743 = vmul.f32 %v742, 0.6931472
    %v744 = vadd.f32 %v741, %v724
    %v745 = vadd.f32 %v743, %v727
    %v746 = vsub.f32 %v720, %v744
    %v747 = vsub.f32 %v721, %v745
    %v748 = vsel %vm245, %v746, -inf
    %v749 = vrot.slane %v748, 4
    %v750 = vmax.f32 %v748, %v749
    %v751 = vrot.slane %v750, 2
    %v752 = vmax.f32 %v750, %v751
    %v753 = vrot.slane %v752, 1
    %v754 = vmax.f32 %v752, %v753
    %v755 = vsel %vm245, %v747, -inf
    %v756 = vrot.slane %v755, 4
    %v757 = vmax.f32 %v755, %v756
    %v758 = vrot.slane %v757, 2
    %v759 = vmax.f32 %v757, %v758
    %v760 = vrot.slane %v759, 1
    %v761 = vmax.f32 %v759, %v760
    %v762 = vsub.f32 %v746, %v754
    %v763 = vsub.f32 %v747, %v761
    %v764 = vmul.f32 %v762, 1.442695
    %v765 = vpow.pop %v764
    %v766 = vmul.f32 %v763, 1.442695
    %v767 = vpow.pop %v766
    %v768 = vsel %vm245, %v765, 0.0
    %v769 = vrot.slane %v768, 4
    %v770 = vadd.f32 %v768, %v769
    %v771 = vrot.slane %v770, 2
    %v772 = vadd.f32 %v770, %v771
    %v773 = vrot.slane %v772, 1
    %v774 = vadd.f32 %v772, %v773
    %v775 = vsel %vm245, %v767, 0.0
    %v776 = vrot.slane %v775, 4
    %v777 = vadd.f32 %v775, %v776
    %v778 = vrot.slane %v777, 2
    %v779 = vadd.f32 %v777, %v778
    %v780 = vrot.slane %v779, 1
    %v781 = vadd.f32 %v779, %v780
    %v782 = vlog2.pop %v774
    %v783 = vmul.f32 %v782, 0.6931472
    %v784 = vlog2.pop %v781
    %v785 = vmul.f32 %v784, 0.6931472
    %v786 = vadd.f32 %v783, %v754
    %v787 = vadd.f32 %v785, %v761
    %v788 = vsub.f32 %v746, %v786
    %v789 = vsub.f32 %v747, %v787
    %v790 = vmul.f32 %v788, 1.442695
    %v791 = vpow.pop %v790
    %v792 = vmul.f32 %v789, 1.442695
    %v793 = vpow.pop %v792
    %794 = vst.msk [vmem:[#allocation8] sm:$0xff] %vm245, %v791
    %795 = vst.msk [vmem:[#allocation8 + $0x8] sm:$0xff] %vm245, %v793
    // Predicated region
    $region26: #{tpu_custom_call.1} parent=1 // pred_check
      _
    $region27: #{tpu_custom_call.1} parent=1 // pred_check_branch
      %797 = sbr.rel (0) target = $region29
    $region28: #{tpu_custom_call.1} parent=1 // pred_region
      %s799 = ssub.s32 256, 256
      %800 = vsyncadd [#allocation4], %s799
      %s801 = sshll.u32 [#allocation8], 4
      %s802 = int_to_ptr.vmem [resolvable:$true] %s801
      %807 = dma.vmem_to_hbm [thread:$0]  %s802, 256, %s3, [#allocation4], 128, 128, 8
    $region29: #{tpu_custom_call.1} parent=1 // pred_fallthru
      _
    // Predicated region
    $region30: #{tpu_custom_call.1} parent=1 // pred_check
      _
    $region31: #{tpu_custom_call.1} parent=1 // pred_check_branch
      %809 = sbr.rel (0) target = $region33
    $region32: #{tpu_custom_call.1} parent=1 // pred_region
      %810 = dma.done [#allocation4], 256
    $region33: #{tpu_custom_call.1} parent=1 // pred_fallthru
      _
    %811 = vsyncpa [#allocation3], 1
    %812 = vsyncpa [#allocation6], 1
    %813 = vsyncpa [#allocation4], 1

</llo_original>
